<compile_context>
chip_gen: v6e
topology: v6e:2x2x1
jax: 0.10.0
libtpu: 0.0.40
codegen_flags: <defaults>
</compile_context>

<pallas_src>
import functools

import numpy as np
import jax
import jax.numpy as jnp
from jax.experimental import pallas as pl
from jax.experimental.pallas import tpu as pltpu


# ----------------------------------------------------------------------------
# Pallas kernel: one grid step = BB folded batch elements, (T, L=BB*S) slab.
# ----------------------------------------------------------------------------
def sfb_kernel(x_ref, wqkv_ref, wom_ref, afb_ref, bias_ref, o_ref, *, n_heads):
    x = x_ref[0]                                   # (T, L) f32
    T, L = x.shape
    H = n_heads

    xb = x.astype(jnp.bfloat16)

    # Frequency-block perturbation on the raw residual path (A @ x).  Depends
    # only on x, so it issues right after the load and overlaps with the
    # attention chain instead of sitting on a serial tail.
    fb = jnp.dot(afb_ref[...], xb, preferred_element_type=jnp.float32)    # (T,L)

    # Fused QKV projection for all heads: one MXU op, one f32->bf16 pack.
    qkv = jnp.dot(wqkv_ref[...], xb, preferred_element_type=jnp.float32)  # (3HT,L)
    qkv_b = qkv.astype(jnp.bfloat16)

    outs = []
    for h in range(H):                             # static python loop, H small
        q = qkv_b[h * T:(h + 1) * T]                                      # (T,L)
        k = qkv_b[(H + h) * T:(H + h + 1) * T]                            # (T,L)
        v = qkv_b[(2 * H + h) * T:(2 * H + h + 1) * T]                    # (T,L)

        # scores[i, j] = q[:, i] . k[:, j]   (1/sqrt(T) pre-folded into Wq)
        scores = jax.lax.dot_general(
            q, k, (((0,), (0,)), ((), ())),
            preferred_element_type=jnp.float32)                           # (L,L)
        # Additive block-diagonal bias (0 / -1e30) loaded from VMEM each head.
        scores = scores + bias_ref[...]
        scores = scores - jnp.max(scores, axis=-1, keepdims=True)
        p = jnp.exp(scores)
        # EUP reciprocal of the (L,1) row sums + VPU multiply instead of a
        # broadcast divide over the whole (L,L) tile.
        inv = pl.reciprocal(jnp.sum(p, axis=-1, keepdims=True), approx=True)
        attn = (p * inv).astype(jnp.bfloat16)

        # out_h[:, i] = sum_j attn[i, j] * v[:, j]   -> (T, L)
        outs.append(jax.lax.dot_general(
            v, attn, (((1,), (1,)), ((), ())),
            preferred_element_type=jnp.float32))

    # Stack heads along sublanes ((H*T, L) fits one bf16 vreg at T=8, H=2) and
    # apply a single output projection with ((I + A) @ Wo) pre-folded on host.
    out_stack = jnp.concatenate(outs, axis=0).astype(jnp.bfloat16)        # (HT,L)
    proj = jnp.dot(wom_ref[...], out_stack, preferred_element_type=jnp.float32)

    # out = (I+A) @ (Wo @ heads + x) = x + A@x + ((I+A)@Wo) @ heads
    o_ref[0] = x + fb + proj


# ----------------------------------------------------------------------------
# Wrapper: lane-dense batch fold + pallas_call.
# ----------------------------------------------------------------------------
def _fold_batch(B, S):
    """Fold batch into lanes so each slab is BB*S = 128 lanes wide (pad B up
    rather than shrinking BB: lane-dense output stores are the biggest lever)."""
    BB = max(1, 128 // S)
    B_pad = ((B + BB - 1) // BB) * BB
    return BB, B_pad, B_pad // BB


@functools.lru_cache(maxsize=None)
def _block_diag_bias_np(L, S):
    idx = np.arange(L) // S
    return np.where(idx[:, None] == idx[None, :], 0.0, -1e30).astype(np.float32)


def sfb_forward(x, kernel_params):
    """x: (B, 1, T, S) float32  ->  (B, 1, T, S) float32."""
    wqkv, wom, afb = kernel_params
    B, _, T, S = x.shape
    H = wom.shape[1] // T

    BB, B_pad, nb = _fold_batch(B, S)
    L = BB * S
    bias = jnp.asarray(_block_diag_bias_np(L, S))

    # squeeze(1), pad batch, and fold batch into the lane axis:
    # (B,1,T,S) -> (nb, T, BB*S)
    x3 = x[:, 0]
    if B_pad != B:
        x3 = jnp.concatenate(
            [x3, jnp.zeros((B_pad - B, T, S), x3.dtype)], axis=0)
    xf = x3.reshape(nb, BB, T, S).transpose(0, 2, 1, 3).reshape(nb, T, L)

    kernel = functools.partial(sfb_kernel, n_heads=H)
    out = pl.pallas_call(
        kernel,
        out_shape=jax.ShapeDtypeStruct((nb, T, L), jnp.float32),
        grid=(nb,),
        in_specs=[
            pl.BlockSpec((1, T, L), lambda b: (b, 0, 0)),          # x slab
            pl.BlockSpec((3 * H * T, T), lambda b: (0, 0)),        # fused Wqkv (bf16)
            pl.BlockSpec((T, H * T), lambda b: (0, 0)),            # (I+A)@Wo   (bf16)
            pl.BlockSpec((T, T), lambda b: (0, 0)),                # A          (bf16)
            pl.BlockSpec((L, L), lambda b: (0, 0)),                # block-diag bias
        ],
        out_specs=pl.BlockSpec((1, T, L), lambda b: (b, 0, 0)),    # lane-dense out
        compiler_params=pltpu.CompilerParams(
            dimension_semantics=("parallel",)),
    )(xf, wqkv, wom, afb, bias)

    # unfold back to (B, 1, T, S)
    out = out.reshape(nb, T, BB, S).transpose(0, 2, 1, 3).reshape(B_pad, T, S)
    return out[:B, None]


# ----------------------------------------------------------------------------
# Parameter construction (plain numpy/JAX glue) + pure-JAX reference.
# ----------------------------------------------------------------------------
def make_params(key, T, H):
    ks = jax.random.split(key, 6)
    s = 1.0 / np.sqrt(T)
    wq = jax.random.normal(ks[0], (H, T, T), jnp.float32) * s
    wk = jax.random.normal(ks[1], (H, T, T), jnp.float32) * s
    wv = jax.random.normal(ks[2], (H, T, T), jnp.float32) * s
    wo = jax.random.normal(ks[3], (T, T * H), jnp.float32) * (1.0 / np.sqrt(T * H))
    F = T // 2 + 1
    wr = jax.random.normal(ks[4], (F, 1), jnp.float32) * 0.1
    wi = jax.random.normal(ks[5], (F, 1), jnp.float32) * 0.1

    # real/imag rDFT matrices (F x T) and their exact left-inverse (T x 2F).
    t = np.arange(T)
    f = np.arange(F)
    ang = 2.0 * np.pi * np.outer(f, t) / T
    cre = np.cos(ang).astype(np.float32)
    cim = (-np.sin(ang)).astype(np.float32)
    M = np.vstack([cre, cim])                     # (2F, T)
    Minv = np.linalg.pinv(M).astype(np.float32)   # (T, 2F); Minv @ M == I
    ire, iim = Minv[:, :F], Minv[:, F:]

    # ---- kernel-ready fused params ----
    scale = np.float32(1.0 / np.sqrt(T))
    wq_np, wk_np, wv_np = np.asarray(wq), np.asarray(wk), np.asarray(wv)
    # Fused QKV stacked as [Wq_0..Wq_{H-1}; Wk_0..; Wv_0..], Wq pre-scaled.
    wqkv = np.concatenate([wq_np * scale, wk_np, wv_np], axis=0).reshape(3 * H * T, T)
    # Frequency-block perturbation:
    # A = ire@(wr*cre - wi*cim) + iim@(wr*cim + wi*cre);  out = y + A@y
    wr_np, wi_np = np.asarray(wr), np.asarray(wi)
    A = (ire @ (wr_np * cre - wi_np * cim)
         + iim @ (wr_np * cim + wi_np * cre)).astype(np.float32)
    # Pre-fold (I + A) into the output projection so the kernel has no serial
    # tail matmul:  out = x + A@x + ((I+A)@Wo)@heads.
    wom = (np.eye(T, dtype=np.float32) + A) @ np.asarray(wo)      # (T, H*T)

    kernel_params = (jnp.asarray(wqkv, jnp.bfloat16),
                     jnp.asarray(wom, jnp.bfloat16),
                     jnp.asarray(A, jnp.bfloat16))
    raw_params = (wq, wk, wv, wo,
                  jnp.asarray(cre), jnp.asarray(cim),
                  jnp.asarray(ire), jnp.asarray(iim), wr, wi)
    return kernel_params, raw_params


def sfb_reference(x, raw_params):
    """Pure-JAX f32 reference of the same forward pass (unfused math)."""
    wq, wk, wv, wo, cre, cim, ire, iim, wr, wi = raw_params
    x3 = x[:, 0]                        # (B, T, S)
    T = x3.shape[1]
    scale = 1.0 / np.sqrt(T)

    def one(xb):
        outs = []
        for h in range(wq.shape[0]):
            q, k, v = wq[h] @ xb, wk[h] @ xb, wv[h] @ xb
            sc = (q.T @ k) * scale
            attn = jax.nn.softmax(sc, axis=-1)
            outs.append(v @ attn.T)
        y = wo @ jnp.concatenate(outs, axis=0) + xb
        xr, xi = cre @ y, cim @ y
        yr, yi = wr * xr - wi * xi, wr * xi + wi * xr
        return y + ire @ yr + iim @ yi

    return jax.vmap(one)(x3)[:, None]


if __name__ == "__main__":
    # batch, n_his, n_vertex, n_heads.  B=16 with S=16 folds into BB=8 batch
    # elements per slab (128 dense lanes) and leaves 2 parallel grid steps.
    B, T, S, H = 16, 8, 16, 2

    key = jax.random.PRNGKey(0)
    kx, kp = jax.random.split(key)
    x = jax.random.normal(kx, (B, 1, T, S), jnp.float32)
    kernel_params, raw_params = make_params(kp, T, H)

    fwd = jax.jit(sfb_forward)
    out = jax.block_until_ready(fwd(x, kernel_params))
    ref = jax.block_until_ready(sfb_reference(x, raw_params))

    assert out.shape == (B, 1, T, S), out.shape
    # Tolerance accounts for bf16 MXU operands + approx reciprocal in the
    # kernel vs the f32 reference.
    np.testing.assert_allclose(np.asarray(out), np.asarray(ref),
                               rtol=3e-2, atol=3e-2)
    print("KERNEL_OK")
</pallas_src>

<mosaic_0001>
module attributes {stable_mosaic.version = 11 : i64} {
  func.func @sfb_kernel(%arg0: i32, %arg1: memref<1x8x128xf32, #tpu.memory_space<vmem>>, %arg2: memref<48x8xbf16, #tpu.memory_space<vmem>>, %arg3: memref<8x16xbf16, #tpu.memory_space<vmem>>, %arg4: memref<8x8xbf16, #tpu.memory_space<vmem>>, %arg5: memref<128x128xf32, #tpu.memory_space<vmem>>, %arg6: memref<1x8x128xf32, #tpu.memory_space<vmem>>) attributes {dimension_semantics = [#tpu.dimension_semantics<parallel>], iteration_bounds = array<i64: 2>, scalar_prefetch = 0 : i64, scratch_operands = 0 : i64, tpu.core_type = #tpu.core_type<tc>, window_params = [{transform_indices = @transform_0, window_bounds = array<i64: 1, 8, 128>}, {pipeline_mode = #tpu.pipeline_mode<synchronous>, transform_indices = @transform_1, window_bounds = array<i64: 48, 8>}, {pipeline_mode = #tpu.pipeline_mode<synchronous>, transform_indices = @transform_2, window_bounds = array<i64: 8, 16>}, {pipeline_mode = #tpu.pipeline_mode<synchronous>, transform_indices = @transform_3, window_bounds = array<i64: 8, 8>}, {pipeline_mode = #tpu.pipeline_mode<synchronous>, transform_indices = @transform_4, window_bounds = array<i64: 128, 128>}, {transform_indices = @transform_5, window_bounds = array<i64: 1, 8, 128>}]} {
    %c0 = arith.constant 0 : index
    %c0_0 = arith.constant 0 : index
    %c0_1 = arith.constant 0 : index
    %0 = vector.load %arg1[%c0, %c0_0, %c0_1] : memref<1x8x128xf32, #tpu.memory_space<vmem>>, vector<1x8x128xf32>
    %1 = vector.shape_cast %0 : vector<1x8x128xf32> to vector<8x128xf32>
    %2 = arith.truncf %1 : vector<8x128xf32> to vector<8x128xbf16>
    %c0_2 = arith.constant 0 : index
    %c0_3 = arith.constant 0 : index
    %3 = vector.load %arg4[%c0_2, %c0_3] : memref<8x8xbf16, #tpu.memory_space<vmem>>, vector<8x8xbf16>
    %cst = arith.constant dense<0.000000e+00> : vector<8x128xf32>
    %4 = tpu.matmul %3, %2, %cst {dimension_numbers = #tpu.dot_dimension_numbers<[1], [0], [0], [1], [0, 0, 1, 1], [], []>} : vector<8x8xbf16>, vector<8x128xbf16>, vector<8x128xf32> -> vector<8x128xf32>
    %c0_4 = arith.constant 0 : index
    %c0_5 = arith.constant 0 : index
    %5 = vector.load %arg2[%c0_4, %c0_5] : memref<48x8xbf16, #tpu.memory_space<vmem>>, vector<48x8xbf16>
    %cst_6 = arith.constant dense<0.000000e+00> : vector<48x128xf32>
    %6 = tpu.matmul %5, %2, %cst_6 {dimension_numbers = #tpu.dot_dimension_numbers<[1], [0], [0], [1], [0, 0, 1, 1], [], []>} : vector<48x8xbf16>, vector<8x128xbf16>, vector<48x128xf32> -> vector<48x128xf32>
    %7 = arith.truncf %6 : vector<48x128xf32> to vector<48x128xbf16>
    %8 = vector.extract_strided_slice %7 {offsets = [0, 0], sizes = [8, 128], strides = [1, 1]} : vector<48x128xbf16> to vector<8x128xbf16>
    %9 = vector.extract_strided_slice %7 {offsets = [16, 0], sizes = [8, 128], strides = [1, 1]} : vector<48x128xbf16> to vector<8x128xbf16>
    %10 = vector.extract_strided_slice %7 {offsets = [32, 0], sizes = [8, 128], strides = [1, 1]} : vector<48x128xbf16> to vector<8x128xbf16>
    %cst_7 = arith.constant dense<0.000000e+00> : vector<128x128xf32>
    %11 = tpu.matmul %8, %9, %cst_7 {dimension_numbers = #tpu.dot_dimension_numbers<[0], [0], [1], [1], [0, 1, 1, 1], [], []>} : vector<8x128xbf16>, vector<8x128xbf16>, vector<128x128xf32> -> vector<128x128xf32>
    %c0_8 = arith.constant 0 : index
    %c0_9 = arith.constant 0 : index
    %12 = vector.load %arg5[%c0_8, %c0_9] : memref<128x128xf32, #tpu.memory_space<vmem>>, vector<128x128xf32>
    %13 = arith.addf %11, %12 : vector<128x128xf32>
    %cst_10 = arith.constant dense<0xFF800000> : vector<128xf32>
    %14 = vector.multi_reduction <maximumf>, %13, %cst_10 [1] : vector<128x128xf32> to vector<128xf32>
    %15 = vector.shape_cast %14 : vector<128xf32> to vector<128x1xf32>
    %16 = vector.broadcast %15 : vector<128x1xf32> to vector<128x128xf32>
    %17 = arith.subf %13, %16 : vector<128x128xf32>
    %18 = math.exp %17 : vector<128x128xf32>
    %cst_11 = arith.constant dense<0.000000e+00> : vector<128xf32>
    %19 = vector.multi_reduction <add>, %18, %cst_11 [1] : vector<128x128xf32> to vector<128xf32>
    %20 = vector.shape_cast %19 : vector<128xf32> to vector<128x1xf32>
    %21 = tpu.reciprocal %20 {approx = true} : vector<128x1xf32> -> vector<128x1xf32>
    %22 = vector.broadcast %21 : vector<128x1xf32> to vector<128x128xf32>
    %23 = arith.mulf %18, %22 : vector<128x128xf32>
    %24 = arith.truncf %23 : vector<128x128xf32> to vector<128x128xbf16>
    %cst_12 = arith.constant dense<0.000000e+00> : vector<8x128xf32>
    %25 = tpu.matmul %10, %24, %cst_12 {dimension_numbers = #tpu.dot_dimension_numbers<[1], [1], [0], [0], [0, 0, 1, 0], [], []>} : vector<8x128xbf16>, vector<128x128xbf16>, vector<8x128xf32> -> vector<8x128xf32>
    %26 = vector.extract_strided_slice %7 {offsets = [8, 0], sizes = [8, 128], strides = [1, 1]} : vector<48x128xbf16> to vector<8x128xbf16>
    %27 = vector.extract_strided_slice %7 {offsets = [24, 0], sizes = [8, 128], strides = [1, 1]} : vector<48x128xbf16> to vector<8x128xbf16>
    %28 = vector.extract_strided_slice %7 {offsets = [40, 0], sizes = [8, 128], strides = [1, 1]} : vector<48x128xbf16> to vector<8x128xbf16>
    %cst_13 = arith.constant dense<0.000000e+00> : vector<128x128xf32>
    %29 = tpu.matmul %26, %27, %cst_13 {dimension_numbers = #tpu.dot_dimension_numbers<[0], [0], [1], [1], [0, 1, 1, 1], [], []>} : vector<8x128xbf16>, vector<8x128xbf16>, vector<128x128xf32> -> vector<128x128xf32>
    %c0_14 = arith.constant 0 : index
    %c0_15 = arith.constant 0 : index
    %30 = vector.load %arg5[%c0_14, %c0_15] : memref<128x128xf32, #tpu.memory_space<vmem>>, vector<128x128xf32>
    %31 = arith.addf %29, %30 : vector<128x128xf32>
    %cst_16 = arith.constant dense<0xFF800000> : vector<128xf32>
    %32 = vector.multi_reduction <maximumf>, %31, %cst_16 [1] : vector<128x128xf32> to vector<128xf32>
    %33 = vector.shape_cast %32 : vector<128xf32> to vector<128x1xf32>
    %34 = vector.broadcast %33 : vector<128x1xf32> to vector<128x128xf32>
    %35 = arith.subf %31, %34 : vector<128x128xf32>
    %36 = math.exp %35 : vector<128x128xf32>
    %cst_17 = arith.constant dense<0.000000e+00> : vector<128xf32>
    %37 = vector.multi_reduction <add>, %36, %cst_17 [1] : vector<128x128xf32> to vector<128xf32>
    %38 = vector.shape_cast %37 : vector<128xf32> to vector<128x1xf32>
    %39 = tpu.reciprocal %38 {approx = true} : vector<128x1xf32> -> vector<128x1xf32>
    %40 = vector.broadcast %39 : vector<128x1xf32> to vector<128x128xf32>
    %41 = arith.mulf %36, %40 : vector<128x128xf32>
    %42 = arith.truncf %41 : vector<128x128xf32> to vector<128x128xbf16>
    %cst_18 = arith.constant dense<0.000000e+00> : vector<8x128xf32>
    %43 = tpu.matmul %28, %42, %cst_18 {dimension_numbers = #tpu.dot_dimension_numbers<[1], [1], [0], [0], [0, 0, 1, 0], [], []>} : vector<8x128xbf16>, vector<128x128xbf16>, vector<8x128xf32> -> vector<8x128xf32>
    %44 = tpu.concatenate %25, %43 in 0 : vector<8x128xf32>, vector<8x128xf32> -> vector<16x128xf32>
    %45 = arith.truncf %44 : vector<16x128xf32> to vector<16x128xbf16>
    %c0_19 = arith.constant 0 : index
    %c0_20 = arith.constant 0 : index
    %46 = vector.load %arg3[%c0_19, %c0_20] : memref<8x16xbf16, #tpu.memory_space<vmem>>, vector<8x16xbf16>
    %cst_21 = arith.constant dense<0.000000e+00> : vector<8x128xf32>
    %47 = tpu.matmul %46, %45, %cst_21 {dimension_numbers = #tpu.dot_dimension_numbers<[1], [0], [0], [1], [0, 0, 1, 1], [], []>} : vector<8x16xbf16>, vector<16x128xbf16>, vector<8x128xf32> -> vector<8x128xf32>
    %48 = arith.addf %1, %4 : vector<8x128xf32>
    %49 = arith.addf %48, %47 : vector<8x128xf32>
    %c0_22 = arith.constant 0 : index
    %c0_23 = arith.constant 0 : index
    %c0_24 = arith.constant 0 : index
    %50 = vector.load %arg6[%c0_22, %c0_23, %c0_24] : memref<1x8x128xf32, #tpu.memory_space<vmem>>, vector<1x8x128xf32>
    %51 = vector.shape_cast %50 : vector<1x8x128xf32> to vector<8x128xf32>
    %52 = vector.shape_cast %49 : vector<8x128xf32> to vector<1x8x128xf32>
    tpu.vector_store %arg6[%c0_22, %c0_23, %c0_24], %52 {strides = array<i32>} : memref<1x8x128xf32, #tpu.memory_space<vmem>>, vector<1x8x128xf32>,
    return
  }
  func.func @transform_0(%arg0: i32) -> (i32, i32, i32) {
    %c0_i32 = arith.constant 0 : i32
    %c0_i32_0 = arith.constant 0 : i32
    %c0_i32_1 = arith.constant 0 : i32
    return %arg0, %c0_i32, %c0_i32_0 : i32, i32, i32
  }
  func.func @transform_1(%arg0: i32) -> (i32, i32) {
    %c0_i32 = arith.constant 0 : i32
    %c0_i32_0 = arith.constant 0 : i32
    %c0_i32_1 = arith.constant 0 : i32
    return %c0_i32, %c0_i32_0 : i32, i32
  }
  func.func @transform_2(%arg0: i32) -> (i32, i32) {
    %c0_i32 = arith.constant 0 : i32
    %c0_i32_0 = arith.constant 0 : i32
    %c0_i32_1 = arith.constant 0 : i32
    return %c0_i32, %c0_i32_0 : i32, i32
  }
  func.func @transform_3(%arg0: i32) -> (i32, i32) {
    %c0_i32 = arith.constant 0 : i32
    %c0_i32_0 = arith.constant 0 : i32
    %c0_i32_1 = arith.constant 0 : i32
    return %c0_i32, %c0_i32_0 : i32, i32
  }
  func.func @transform_4(%arg0: i32) -> (i32, i32) {
    %c0_i32 = arith.constant 0 : i32
    %c0_i32_0 = arith.constant 0 : i32
    %c0_i32_1 = arith.constant 0 : i32
    return %c0_i32, %c0_i32_0 : i32, i32
  }
  func.func @transform_5(%arg0: i32) -> (i32, i32, i32) {
    %c0_i32 = arith.constant 0 : i32
    %c0_i32_0 = arith.constant 0 : i32
    %c0_i32_1 = arith.constant 0 : i32
    return %arg0, %c0_i32, %c0_i32_0 : i32, i32, i32
  }
}

</mosaic_0001>

<llo_original>
// kernel: sfb_forward.1
$region0: #{sfb_forward.1}
  #allocation0 [shape = 'u32[]', space=smem, size = 0x4, offset = 0x4, fixed_abs, tag = 'smem constant byte address 0x4 - core index']
  #allocation1 [shape = 'u32[144,128]{1,0:T(1,128)}', space=vmem, size = 0x12000, scoped, tag = 'internal scratch']
  %s0 = inlined_call_operand.vmem [shape: f32[2,8,128], index: 0, kind: input, shape index: {}]
  %s1 = inlined_call_operand.vmem [shape: bf16[48,8], index: 1, kind: input, shape index: {}]
  %s2 = inlined_call_operand.vmem [shape: bf16[8,16], index: 2, kind: input, shape index: {}]
  %s3 = inlined_call_operand.vmem [shape: bf16[8,8], index: 3, kind: input, shape index: {}]
  %s4 = inlined_call_operand.vmem [shape: f32[128,128], index: 4, kind: input, shape index: {}]
  %s5 = inlined_call_operand.vmem [shape: f32[2,8,128], index: 5, kind: output, shape index: {}]
  %s6 = sld [smem:[#allocation0]]
  $region53: #{sfb_forward.1} parent=0
    _
  %s8 = ssub.s32 1, %s6
  %s9 = scalar_select 0, %s8, %s6
  loop: start=0, step=1, limit=4
  $region2: #{sfb_forward.1} parent=0 // loop_pre_header
    _
  $region3: #{sfb_forward.1} parent=0 // loop_header
    %s11 = sphi 0, %s15
    %p12 = scmp.ge.s32.totalorder %s11, 4
    %s21 = sphi 0, %s23
    %s24 = sphi 0, %s21
    %s25 = sphi 0, %s24
    %s41 = sphi 0, %s25
    %s45 = sphi 0, %s45
    %s47 = sphi 0, %s45
    %s48 = sphi 0, %s47
    %s62 = sphi 0, %s48
    %s66 = sphi 0, %s66
    %s68 = sphi 0, %s66
    %s69 = sphi 0, %s68
    %s83 = sphi 0, %s69
    %s87 = sphi 0, %s87
    %s89 = sphi 0, %s87
    %s90 = sphi 0, %s89
    %s104 = sphi 0, %s90
    %s108 = sphi 0, %s108
    %s110 = sphi 0, %s108
    %s111 = sphi 0, %s110
    %s125 = sphi 0, %s111
    %s131 = sphi 0, %s133
    %s134 = sphi 0, %s131
    %s135 = sphi 0, %s134
    %s151 = sphi 0, %s135
  $region4: #{sfb_forward.1} parent=0 // loop_header_branch
    %14 = sbr.rel (%p12) target = $region8
  $region5: #{sfb_forward.1} parent=0 // loop_body
    %s16 = ssub.s32 %s11, 1
    %s17 = ssub.s32 %s11, 2
    %s18 = sadd.s32 %s11, 1
    %s19 = ssub.s32 %s11, %s18
    %p20 = scmp.eq.s32.totalorder %s19, 0
    %s22 = sadd.s32 %s21, 1
    %s23 = scalar_select %p20, %s21, %s22
    %p26 = pneg %p20
    %p27 = scmp.eq.s32.totalorder %s11, 1
    %p28 = por %p26, %p27
    %p29 = scmp.ne.s32.totalorder %s21, %s24
    %p30 = scmp.eq.s32.totalorder %s11, 0
    %p31 = por %p29, %p30
    %p32 = scmp.ne.s32.totalorder %s21, %s24
    %p33 = scmp.eq.s32.totalorder %s16, 1
    %p34 = por %p32, %p33
    %p35 = scmp.ne.s32.totalorder %s24, %s25
    %p36 = scmp.eq.s32.totalorder %s16, 0
    %p37 = por %p35, %p36
    %p38 = scmp.ne.s32.totalorder %s24, %s25
    %p39 = scmp.eq.s32.totalorder %s17, 1
    %p40 = por %p38, %p39
    %p42 = scmp.ne.s32.totalorder %s25, %s41
    %p43 = scmp.eq.s32.totalorder %s17, 0
    %p44 = por %p42, %p43
    %s46 = sadd.s32 %s45, 1
    %p49 = scmp.eq.s32.totalorder %s11, 1
    %p50 = scmp.ne.s32.totalorder %s45, %s47
    %p51 = scmp.eq.s32.totalorder %s11, 0
    %p52 = por %p50, %p51
    %p53 = scmp.ne.s32.totalorder %s45, %s47
    %p54 = scmp.eq.s32.totalorder %s16, 1
    %p55 = por %p53, %p54
    %p56 = scmp.ne.s32.totalorder %s47, %s48
    %p57 = scmp.eq.s32.totalorder %s16, 0
    %p58 = por %p56, %p57
    %p59 = scmp.ne.s32.totalorder %s47, %s48
    %p60 = scmp.eq.s32.totalorder %s17, 1
    %p61 = por %p59, %p60
    %p63 = scmp.ne.s32.totalorder %s48, %s62
    %p64 = scmp.eq.s32.totalorder %s17, 0
    %p65 = por %p63, %p64
    %s67 = sadd.s32 %s66, 1
    %p70 = scmp.eq.s32.totalorder %s11, 1
    %p71 = scmp.ne.s32.totalorder %s66, %s68
    %p72 = scmp.eq.s32.totalorder %s11, 0
    %p73 = por %p71, %p72
    %p74 = scmp.ne.s32.totalorder %s66, %s68
    %p75 = scmp.eq.s32.totalorder %s16, 1
    %p76 = por %p74, %p75
    %p77 = scmp.ne.s32.totalorder %s68, %s69
    %p78 = scmp.eq.s32.totalorder %s16, 0
    %p79 = por %p77, %p78
    %p80 = scmp.ne.s32.totalorder %s68, %s69
    %p81 = scmp.eq.s32.totalorder %s17, 1
    %p82 = por %p80, %p81
    %p84 = scmp.ne.s32.totalorder %s69, %s83
    %p85 = scmp.eq.s32.totalorder %s17, 0
    %p86 = por %p84, %p85
    %s88 = sadd.s32 %s87, 1
    %p91 = scmp.eq.s32.totalorder %s11, 1
    %p92 = scmp.ne.s32.totalorder %s87, %s89
    %p93 = scmp.eq.s32.totalorder %s11, 0
    %p94 = por %p92, %p93
    %p95 = scmp.ne.s32.totalorder %s87, %s89
    %p96 = scmp.eq.s32.totalorder %s16, 1
    %p97 = por %p95, %p96
    %p98 = scmp.ne.s32.totalorder %s89, %s90
    %p99 = scmp.eq.s32.totalorder %s16, 0
    %p100 = por %p98, %p99
    %p101 = scmp.ne.s32.totalorder %s89, %s90
    %p102 = scmp.eq.s32.totalorder %s17, 1
    %p103 = por %p101, %p102
    %p105 = scmp.ne.s32.totalorder %s90, %s104
    %p106 = scmp.eq.s32.totalorder %s17, 0
    %p107 = por %p105, %p106
    %s109 = sadd.s32 %s108, 1
    %p112 = scmp.eq.s32.totalorder %s11, 1
    %p113 = scmp.ne.s32.totalorder %s108, %s110
    %p114 = scmp.eq.s32.totalorder %s11, 0
    %p115 = por %p113, %p114
    %p116 = scmp.ne.s32.totalorder %s108, %s110
    %p117 = scmp.eq.s32.totalorder %s16, 1
    %p118 = por %p116, %p117
    %p119 = scmp.ne.s32.totalorder %s110, %s111
    %p120 = scmp.eq.s32.totalorder %s16, 0
    %p121 = por %p119, %p120
    %p122 = scmp.ne.s32.totalorder %s110, %s111
    %p123 = scmp.eq.s32.totalorder %s17, 1
    %p124 = por %p122, %p123
    %p126 = scmp.ne.s32.totalorder %s111, %s125
    %p127 = scmp.eq.s32.totalorder %s17, 0
    %p128 = por %p126, %p127
    %s129 = ssub.s32 %s11, %s18
    %p130 = scmp.eq.s32.totalorder %s129, 0
    %s132 = sadd.s32 %s131, 1
    %s133 = scalar_select %p130, %s131, %s132
    %p136 = pneg %p130
    %p137 = scmp.eq.s32.totalorder %s11, 1
    %p138 = por %p136, %p137
    %p139 = scmp.ne.s32.totalorder %s131, %s134
    %p140 = scmp.eq.s32.totalorder %s11, 0
    %p141 = por %p139, %p140
    %p142 = scmp.ne.s32.totalorder %s131, %s134
    %p143 = scmp.eq.s32.totalorder %s16, 1
    %p144 = por %p142, %p143
    %p145 = scmp.ne.s32.totalorder %s134, %s135
    %p146 = scmp.eq.s32.totalorder %s16, 0
    %p147 = por %p145, %p146
    %p148 = scmp.ne.s32.totalorder %s134, %s135
    %p149 = scmp.eq.s32.totalorder %s17, 1
    %p150 = por %p148, %p149
    %p152 = scmp.ne.s32.totalorder %s135, %s151
    %p153 = scmp.eq.s32.totalorder %s17, 0
    %p154 = por %p152, %p153
    %p155 = scmp.le.s32.totalorder 1, %s11
    %p156 = scmp.lt.s32.totalorder %s11, 3
    %p157 = pnand %p155, %p156
    %p158 = pneg %p157
    // Predicated region
    $region9: #{sfb_forward.1} parent=5 // pred_check
      _
    $region10: #{sfb_forward.1} parent=5 // pred_check_branch
      %160 = sbr.rel (%p157) target = $region12
    $region11: #{sfb_forward.1} parent=5 // pred_region
      %s161 = ssub.s32 %s11, 1
      // Predicated region
      $region13: #{sfb_forward.1} parent=11 // pred_check
        %p162 = pneg %p58
      $region14: #{sfb_forward.1} parent=11 // pred_check_branch
        %164 = sbr.rel (%p162) target = $region16
      $region15: #{sfb_forward.1} parent=11 // pred_region
        _
      $region16: #{sfb_forward.1} parent=11 // pred_fallthru
        _
      // Predicated region
      $region17: #{sfb_forward.1} parent=11 // pred_check
        %p165 = pneg %p79
      $region18: #{sfb_forward.1} parent=11 // pred_check_branch
        %167 = sbr.rel (%p165) target = $region20
      $region19: #{sfb_forward.1} parent=11 // pred_region
        _
      $region20: #{sfb_forward.1} parent=11 // pred_fallthru
        _
      // Predicated region
      $region21: #{sfb_forward.1} parent=11 // pred_check
        %p168 = pneg %p100
      $region22: #{sfb_forward.1} parent=11 // pred_check_branch
        %170 = sbr.rel (%p168) target = $region24
      $region23: #{sfb_forward.1} parent=11 // pred_region
        _
      $region24: #{sfb_forward.1} parent=11 // pred_fallthru
        _
      // Predicated region
      $region25: #{sfb_forward.1} parent=11 // pred_check
        %p171 = pneg %p121
      $region26: #{sfb_forward.1} parent=11 // pred_check_branch
        %173 = sbr.rel (%p171) target = $region28
      $region27: #{sfb_forward.1} parent=11 // pred_region
        _
      $region28: #{sfb_forward.1} parent=11 // pred_fallthru
        _
    $region12: #{sfb_forward.1} parent=5 // pred_fallthru
      _
    %p174 = scmp.lt.s32.totalorder %s11, 2
    // Predicated region
    $region29: #{sfb_forward.1} parent=5 // pred_check
      %p175 = pneg %p174
    $region30: #{sfb_forward.1} parent=5 // pred_check_branch
      %177 = sbr.rel (%p175) target = $region32
    $region31: #{sfb_forward.1} parent=5 // pred_region
      // Predicated region
      $region33: #{sfb_forward.1} parent=31 // pred_check
        %p178 = pneg %p31
      $region34: #{sfb_forward.1} parent=31 // pred_check_branch
        %180 = sbr.rel (%p178) target = $region36
      $region35: #{sfb_forward.1} parent=31 // pred_region
        %p181 = scmp.lt.s32.totalorder %s11, 1
        %s182 = scalar_select %p181, %s11, 1
        %s183 = smul.addr %s182, 8
        %s184 = scalar_lea.vmem %s0, %s183
      $region36: #{sfb_forward.1} parent=31 // pred_fallthru
        _
    $region32: #{sfb_forward.1} parent=5 // pred_fallthru
      _
    %p185 = scmp.le.s32.totalorder 1, %s11
    %p186 = scmp.lt.s32.totalorder %s11, 3
    %p187 = pnand %p185, %p186
    %p188 = pneg %p187
    // Predicated region
    $region37: #{sfb_forward.1} parent=5 // pred_check
      _
    $region38: #{sfb_forward.1} parent=5 // pred_check_branch
      %190 = sbr.rel (%p187) target = $region40
    $region39: #{sfb_forward.1} parent=5 // pred_region
      %s191 = ssub.s32 %s11, 1
      %p192 = scmp.lt.s32.totalorder %s16, 1
      %s193 = scalar_select %p192, %s16, 1
      %s194 = smul.addr %s193, 8
      %s195 = scalar_lea.vmem %s0, %s194
      %p196 = pneg %p37
      %p197 = pneg %p34
      %p198 = pneg %p58
      %p199 = pneg %p55
      %p200 = pneg %p79
      %p201 = pneg %p76
      %p202 = pneg %p100
      %p203 = pneg %p97
      %p204 = pneg %p121
      %p205 = pneg %p118
      %p206 = pneg %p147
      %p207 = pneg %p144
      %p208 = scmp.lt.s32.totalorder %s16, 1
      %s209 = scalar_select %p208, %s16, 1
      %s210 = smul.addr %s209, 8
      %s211 = scalar_lea.vmem %s5, %s210
      %p212 = scmp.lt.s32.totalorder %s16, 1
      %s213 = scalar_select %p212, %s16, 1
      %s214 = smul.addr %s213, 8
      %s215 = scalar_lea.vmem %s0, %s214
      %p216 = scmp.lt.s32.totalorder %s16, 1
      %s217 = scalar_select %p216, %s16, 1
      %s218 = smul.addr %s217, 8
      %s219 = scalar_lea.vmem %s5, %s218
      %v221 = vld [vmem:[%s215] sm:$0xff]
      %v222 = vpack.c.bf16 %v221, %v221
      %v223 = vld [vmem:[%s3] sm:$0xf]
      %vm224 = vcmask 64512
      %v226 = vsel %vm224, %v223, 0
      %vm228 = vcmask 1043456
      %v230 = vsel %vm228, %v222, 0
      %232 = vmatprep.subr.bf16.mxu0 0
      %233 = vmatpush1.bf16.msra.mxu0 0
      %234 = vmatprep.subr.bf16.mxu0 0
      %235 = vmatpush1.bf16.msra.mxu0 0
      %236 = vmatprep.subr.bf16.mxu0 0
      %237 = vmatpush1.bf16.msra.mxu0 0
      %238 = vmatprep.subr.bf16.mxu0 0
      %239 = vmatpush1.bf16.msra.mxu0 0
      %240 = vmatprep.subr.bf16.mxu0 0
      %241 = vmatpush1.bf16.msra.mxu0 0
      %242 = vmatprep.subr.bf16.mxu0 0
      %243 = vmatpush1.bf16.msra.mxu0 0
      %244 = vmatprep.subr.bf16.mxu0 0
      %245 = vmatpush1.bf16.msra.mxu0 0
      %246 = vmatprep.subr.bf16.mxu0 0
      %247 = vmatpush1.bf16.msra.mxu0 %v230
      %248 = vmatprep.subr.bf16.mxu0 0
      %249 = vmatpush2.bf16.msra.mxu0 0
      %250 = vmatprep.subr.bf16.mxu0 0
      %251 = vmatpush2.bf16.msra.mxu0 0
      %252 = vmatprep.subr.bf16.mxu0 0
      %253 = vmatpush2.bf16.msra.mxu0 0
      %254 = vmatprep.subr.bf16.mxu0 0
      %255 = vmatpush2.bf16.msra.mxu0 0
      %256 = vmatprep.subr.bf16.mxu0 0
      %257 = vmatpush2.bf16.msra.mxu0 0
      %258 = vmatprep.subr.bf16.mxu0 0
      %259 = vmatpush2.bf16.msra.mxu0 0
      %260 = vmatprep.subr.bf16.mxu0 0
      %261 = vmatpush2.bf16.msra.mxu0 0
      %262 = vmatprep.subr.bf16.mxu0 0
      %263 = vmatpush2.bf16.msra.mxu0 0
      %264 = vmatprep.mubr.bf16.mxu0 0
      %265 = vmatmul.mubr.bf16.gmra.mxu0 %v226
      %v266 = vpop.f32.mrf.mxu0
      %v267 = vadd.f32 0.0, %v266
      %v268 = vpop.f32.mrf.mxu0
      %v269 = vpop.f32.mrf.mxu0
      %v270 = vpop.f32.mrf.mxu0
      %271 = vdwg.mxu0
      %v272 = vld [vmem:[%s1] sm:$0xf]
      %v273 = vld [vmem:[%s1 + $0x4] sm:$0xf]
      %v274 = vld [vmem:[%s1 + $0x8] sm:$0xf]
      %v275 = vld [vmem:[%s1 + $0xc] sm:$0xf]
      %v276 = vld [vmem:[%s1 + $0x10] sm:$0xf]
      %v277 = vld [vmem:[%s1 + $0x14] sm:$0xf]
      %v284 = vunpack.c.l.b16 %v272
      %v285 = vunpack.c.l.b16 %v273
      %v286 = vunpack.c.l.b16 %v274
      %v287 = vunpack.c.l.b16 %v275
      %v288 = vunpack.c.l.b16 %v276
      %v289 = vunpack.c.l.b16 %v277
      %v290 = vpack.c.b16 %v285, %v284
      %v291 = vpack.c.b16 %v287, %v286
      %v292 = vpack.c.b16 %v289, %v288
      %v294 = vsel %vm224, %v290, 0
      %v297 = vsel %vm224, %v291, 0
      %v300 = vsel %vm224, %v292, 0
      %302 = vmatprep.subr.bf16.mxu0 0
      %303 = vmatpush1.bf16.msra.mxu0 0
      %304 = vmatprep.subr.bf16.mxu0 0
      %305 = vmatpush1.bf16.msra.mxu0 0
      %306 = vmatprep.subr.bf16.mxu0 0
      %307 = vmatpush1.bf16.msra.mxu0 0
      %308 = vmatprep.subr.bf16.mxu0 0
      %309 = vmatpush1.bf16.msra.mxu0 0
      %310 = vmatprep.subr.bf16.mxu0 0
      %311 = vmatpush1.bf16.msra.mxu0 0
      %312 = vmatprep.subr.bf16.mxu0 0
      %313 = vmatpush1.bf16.msra.mxu0 0
      %314 = vmatprep.subr.bf16.mxu0 0
      %315 = vmatpush1.bf16.msra.mxu0 0
      %316 = vmatprep.subr.bf16.mxu0 0
      %317 = vmatpush1.bf16.msra.mxu0 %v230
      %318 = vmatprep.subr.bf16.mxu0 0
      %319 = vmatpush2.bf16.msra.mxu0 0
      %320 = vmatprep.subr.bf16.mxu0 0
      %321 = vmatpush2.bf16.msra.mxu0 0
      %322 = vmatprep.subr.bf16.mxu0 0
      %323 = vmatpush2.bf16.msra.mxu0 0
      %324 = vmatprep.subr.bf16.mxu0 0
      %325 = vmatpush2.bf16.msra.mxu0 0
      %326 = vmatprep.subr.bf16.mxu0 0
      %327 = vmatpush2.bf16.msra.mxu0 0
      %328 = vmatprep.subr.bf16.mxu0 0
      %329 = vmatpush2.bf16.msra.mxu0 0
      %330 = vmatprep.subr.bf16.mxu0 0
      %331 = vmatpush2.bf16.msra.mxu0 0
      %332 = vmatprep.subr.bf16.mxu0 0
      %333 = vmatpush2.bf16.msra.mxu0 0
      %334 = vmatprep.mubr.bf16.mxu0 0
      %335 = vmatmul.mubr.bf16.gmra.mxu0 %v294
      %v336 = vpop.f32.mrf.mxu0
      %v337 = vadd.f32 0.0, %v336
      %v338 = vpop.f32.mrf.mxu0
      %v339 = vpop.f32.mrf.mxu0
      %v340 = vadd.f32 0.0, %v339
      %v341 = vpop.f32.mrf.mxu0
      %342 = vmatprep.mubr.bf16.mxu0 0
      %343 = vmatmul.mubr.bf16.gmra.mxu0 %v297
      %v344 = vpop.f32.mrf.mxu0
      %v345 = vadd.f32 0.0, %v344
      %v346 = vpop.f32.mrf.mxu0
      %v347 = vpop.f32.mrf.mxu0
      %v348 = vadd.f32 0.0, %v347
      %v349 = vpop.f32.mrf.mxu0
      %350 = vmatprep.mubr.bf16.mxu0 0
      %351 = vmatmul.mubr.bf16.gmra.mxu0 %v300
      %v352 = vpop.f32.mrf.mxu0
      %v353 = vadd.f32 0.0, %v352
      %v354 = vpop.f32.mrf.mxu0
      %v355 = vpop.f32.mrf.mxu0
      %v356 = vadd.f32 0.0, %v355
      %v357 = vpop.f32.mrf.mxu0
      %358 = vdwg.mxu0
      %v359 = vpack.c.bf16 %v340, %v337
      %v360 = vpack.c.bf16 %v348, %v345
      %v361 = vpack.c.bf16 %v356, %v353
      %v362 = vld [vmem:[%s4] sm:$0xff]
      %v363 = vld [vmem:[%s4 + $0x8] sm:$0xff]
      %v364 = vld [vmem:[%s4 + $0x10] sm:$0xff]
      %v365 = vld [vmem:[%s4 + $0x18] sm:$0xff]
      %v366 = vld [vmem:[%s4 + $0x20] sm:$0xff]
      %v367 = vld [vmem:[%s4 + $0x28] sm:$0xff]
      %v368 = vld [vmem:[%s4 + $0x30] sm:$0xff]
      %v369 = vld [vmem:[%s4 + $0x38] sm:$0xff]
      %v370 = vld [vmem:[%s4 + $0x40] sm:$0xff]
      %v371 = vld [vmem:[%s4 + $0x48] sm:$0xff]
      %v372 = vld [vmem:[%s4 + $0x50] sm:$0xff]
      %v373 = vld [vmem:[%s4 + $0x58] sm:$0xff]
      %v374 = vld [vmem:[%s4 + $0x60] sm:$0xff]
      %v375 = vld [vmem:[%s4 + $0x68] sm:$0xff]
      %v376 = vld [vmem:[%s4 + $0x70] sm:$0xff]
      %v377 = vld [vmem:[%s4 + $0x78] sm:$0xff]
      %378 = vxpose.xlu0.c.b16.start [1/8] %v359, 128
      %379 = vxpose.xlu0.c.b16.cont [2/8] 0, 128
      %380 = vxpose.xlu0.c.b16.cont [3/8] 0, 128
      %381 = vxpose.xlu0.c.b16.cont [4/8] 0, 128
      %382 = vxpose.xlu0.c.b16.cont [5/8] 0, 128
      %383 = vxpose.xlu0.c.b16.cont [6/8] 0, 128
      %384 = vxpose.xlu0.c.b16.cont [7/8] 0, 128
      %385 = vxpose.xlu0.c.b16.end [8/8] 0, 128
      %v386 = vpop.trf.xlu0
      %v387 = vpop.trf.xlu0
      %v388 = vpop.trf.xlu0
      %v389 = vpop.trf.xlu0
      %v390 = vpop.trf.xlu0
      %v391 = vpop.trf.xlu0
      %v392 = vpop.trf.xlu0
      %v393 = vpop.trf.xlu0
      %v395 = vsel %vm224, %v386, 0
      %v398 = vsel %vm224, %v387, 0
      %v401 = vsel %vm224, %v388, 0
      %v404 = vsel %vm224, %v389, 0
      %v407 = vsel %vm224, %v390, 0
      %v410 = vsel %vm224, %v391, 0
      %v413 = vsel %vm224, %v392, 0
      %v416 = vsel %vm224, %v393, 0
      %v419 = vsel %vm228, %v360, 0
      %421 = vmatprep.subr.bf16.mxu0 0
      %422 = vmatpush1.bf16.msra.mxu0 0
      %423 = vmatprep.subr.bf16.mxu0 0
      %424 = vmatpush1.bf16.msra.mxu0 0
      %425 = vmatprep.subr.bf16.mxu0 0
      %426 = vmatpush1.bf16.msra.mxu0 0
      %427 = vmatprep.subr.bf16.mxu0 0
      %428 = vmatpush1.bf16.msra.mxu0 0
      %429 = vmatprep.subr.bf16.mxu0 0
      %430 = vmatpush1.bf16.msra.mxu0 0
      %431 = vmatprep.subr.bf16.mxu0 0
      %432 = vmatpush1.bf16.msra.mxu0 0
      %433 = vmatprep.subr.bf16.mxu0 0
      %434 = vmatpush1.bf16.msra.mxu0 0
      %435 = vmatprep.subr.bf16.mxu0 0
      %436 = vmatpush1.bf16.msra.mxu0 %v419
      %437 = vmatprep.subr.bf16.mxu0 0
      %438 = vmatpush2.bf16.msra.mxu0 0
      %439 = vmatprep.subr.bf16.mxu0 0
      %440 = vmatpush2.bf16.msra.mxu0 0
      %441 = vmatprep.subr.bf16.mxu0 0
      %442 = vmatpush2.bf16.msra.mxu0 0
      %443 = vmatprep.subr.bf16.mxu0 0
      %444 = vmatpush2.bf16.msra.mxu0 0
      %445 = vmatprep.subr.bf16.mxu0 0
      %446 = vmatpush2.bf16.msra.mxu0 0
      %447 = vmatprep.subr.bf16.mxu0 0
      %448 = vmatpush2.bf16.msra.mxu0 0
      %449 = vmatprep.subr.bf16.mxu0 0
      %450 = vmatpush2.bf16.msra.mxu0 0
      %451 = vmatprep.subr.bf16.mxu0 0
      %452 = vmatpush2.bf16.msra.mxu0 0
      %453 = vmatprep.mubr.bf16.mxu0 0
      %454 = vmatmul.mubr.bf16.gmra.mxu0 %v395
      %v455 = vpop.f32.mrf.mxu0
      %v456 = vadd.f32 %v362, %v455
      %v457 = vpop.f32.mrf.mxu0
      %v458 = vpop.f32.mrf.mxu0
      %v459 = vadd.f32 %v363, %v458
      %v460 = vpop.f32.mrf.mxu0
      %461 = vmatprep.mubr.bf16.mxu0 0
      %462 = vmatmul.mubr.bf16.gmra.mxu0 %v398
      %v463 = vpop.f32.mrf.mxu0
      %v464 = vadd.f32 %v364, %v463
      %v465 = vpop.f32.mrf.mxu0
      %v466 = vpop.f32.mrf.mxu0
      %v467 = vadd.f32 %v365, %v466
      %v468 = vpop.f32.mrf.mxu0
      %469 = vmatprep.mubr.bf16.mxu0 0
      %470 = vmatmul.mubr.bf16.gmra.mxu0 %v401
      %v471 = vpop.f32.mrf.mxu0
      %v472 = vadd.f32 %v366, %v471
      %v473 = vpop.f32.mrf.mxu0
      %v474 = vpop.f32.mrf.mxu0
      %v475 = vadd.f32 %v367, %v474
      %v476 = vpop.f32.mrf.mxu0
      %477 = vmatprep.mubr.bf16.mxu0 0
      %478 = vmatmul.mubr.bf16.gmra.mxu0 %v404
      %v479 = vpop.f32.mrf.mxu0
      %v480 = vadd.f32 %v368, %v479
      %v481 = vpop.f32.mrf.mxu0
      %v482 = vpop.f32.mrf.mxu0
      %v483 = vadd.f32 %v369, %v482
      %v484 = vpop.f32.mrf.mxu0
      %485 = vmatprep.mubr.bf16.mxu0 0
      %486 = vmatmul.mubr.bf16.gmra.mxu0 %v407
      %v487 = vpop.f32.mrf.mxu0
      %v488 = vadd.f32 %v370, %v487
      %v489 = vpop.f32.mrf.mxu0
      %v490 = vpop.f32.mrf.mxu0
      %v491 = vadd.f32 %v371, %v490
      %v492 = vpop.f32.mrf.mxu0
      %493 = vmatprep.mubr.bf16.mxu0 0
      %494 = vmatmul.mubr.bf16.gmra.mxu0 %v410
      %v495 = vpop.f32.mrf.mxu0
      %v496 = vadd.f32 %v372, %v495
      %v497 = vpop.f32.mrf.mxu0
      %v498 = vpop.f32.mrf.mxu0
      %v499 = vadd.f32 %v373, %v498
      %v500 = vpop.f32.mrf.mxu0
      %501 = vmatprep.mubr.bf16.mxu0 0
      %502 = vmatmul.mubr.bf16.gmra.mxu0 %v413
      %v503 = vpop.f32.mrf.mxu0
      %v504 = vadd.f32 %v374, %v503
      %v505 = vpop.f32.mrf.mxu0
      %v506 = vpop.f32.mrf.mxu0
      %v507 = vadd.f32 %v375, %v506
      %v508 = vpop.f32.mrf.mxu0
      %509 = vmatprep.mubr.bf16.mxu0 0
      %510 = vmatmul.mubr.bf16.gmra.mxu0 %v416
      %v511 = vpop.f32.mrf.mxu0
      %v512 = vadd.f32 %v376, %v511
      %v513 = vpop.f32.mrf.mxu0
      %v514 = vpop.f32.mrf.mxu0
      %v515 = vadd.f32 %v377, %v514
      %v516 = vpop.f32.mrf.mxu0
      %517 = vdwg.mxu0
      %518 = vmax.xlane.f32.xlu0 %v456
      %v519 = vpop.xlane.xlu0 %518
      %520 = vmax.xlane.f32.xlu0 %v459
      %v521 = vpop.xlane.xlu0 %520
      %522 = vmax.xlane.f32.xlu0 %v464
      %v523 = vpop.xlane.xlu0 %522
      %524 = vmax.xlane.f32.xlu0 %v467
      %v525 = vpop.xlane.xlu0 %524
      %526 = vmax.xlane.f32.xlu0 %v472
      %v527 = vpop.xlane.xlu0 %526
      %528 = vmax.xlane.f32.xlu0 %v475
      %v529 = vpop.xlane.xlu0 %528
      %530 = vmax.xlane.f32.xlu0 %v480
      %v531 = vpop.xlane.xlu0 %530
      %532 = vmax.xlane.f32.xlu0 %v483
      %v533 = vpop.xlane.xlu0 %532
      %534 = vmax.xlane.f32.xlu0 %v488
      %v535 = vpop.xlane.xlu0 %534
      %536 = vmax.xlane.f32.xlu0 %v491
      %v537 = vpop.xlane.xlu0 %536
      %538 = vmax.xlane.f32.xlu0 %v496
      %v539 = vpop.xlane.xlu0 %538
      %540 = vmax.xlane.f32.xlu0 %v499
      %v541 = vpop.xlane.xlu0 %540
      %542 = vmax.xlane.f32.xlu0 %v504
      %v543 = vpop.xlane.xlu0 %542
      %544 = vmax.xlane.f32.xlu0 %v507
      %v545 = vpop.xlane.xlu0 %544
      %546 = vmax.xlane.f32.xlu0 %v512
      %v547 = vpop.xlane.xlu0 %546
      %548 = vmax.xlane.f32.xlu0 %v515
      %v549 = vpop.xlane.xlu0 %548
      %v550 = vsub.f32 %v456, %v519
      %v551 = vsub.f32 %v459, %v521
      %v552 = vsub.f32 %v464, %v523
      %v553 = vsub.f32 %v467, %v525
      %v554 = vsub.f32 %v472, %v527
      %v555 = vsub.f32 %v475, %v529
      %v556 = vsub.f32 %v480, %v531
      %v557 = vsub.f32 %v483, %v533
      %v558 = vsub.f32 %v488, %v535
      %v559 = vsub.f32 %v491, %v537
      %v560 = vsub.f32 %v496, %v539
      %v561 = vsub.f32 %v499, %v541
      %v562 = vsub.f32 %v504, %v543
      %v563 = vsub.f32 %v507, %v545
      %v564 = vsub.f32 %v512, %v547
      %v565 = vsub.f32 %v515, %v549
      %v566 = vmul.f32 %v550, 1.442695
      %v567 = vpow.pop %v566
      %v568 = vmul.f32 %v551, 1.442695
      %v569 = vpow.pop %v568
      %v570 = vmul.f32 %v552, 1.442695
      %v571 = vpow.pop %v570
      %v572 = vmul.f32 %v553, 1.442695
      %v573 = vpow.pop %v572
      %v574 = vmul.f32 %v554, 1.442695
      %v575 = vpow.pop %v574
      %v576 = vmul.f32 %v555, 1.442695
      %v577 = vpow.pop %v576
      %v578 = vmul.f32 %v556, 1.442695
      %v579 = vpow.pop %v578
      %v580 = vmul.f32 %v557, 1.442695
      %v581 = vpow.pop %v580
      %v582 = vmul.f32 %v558, 1.442695
      %v583 = vpow.pop %v582
      %v584 = vmul.f32 %v559, 1.442695
      %v585 = vpow.pop %v584
      %v586 = vmul.f32 %v560, 1.442695
      %v587 = vpow.pop %v586
      %v588 = vmul.f32 %v561, 1.442695
      %v589 = vpow.pop %v588
      %v590 = vmul.f32 %v562, 1.442695
      %v591 = vpow.pop %v590
      %v592 = vmul.f32 %v563, 1.442695
      %v593 = vpow.pop %v592
      %v594 = vmul.f32 %v564, 1.442695
      %v595 = vpow.pop %v594
      %v596 = vmul.f32 %v565, 1.442695
      %v597 = vpow.pop %v596
      %598 = vadd.xlane.f32.xlu0 %v567
      %v599 = vpop.xlane.xlu0 %598
      %600 = vadd.xlane.f32.xlu0 %v569
      %v601 = vpop.xlane.xlu0 %600
      %602 = vadd.xlane.f32.xlu0 %v571
      %v603 = vpop.xlane.xlu0 %602
      %604 = vadd.xlane.f32.xlu0 %v573
      %v605 = vpop.xlane.xlu0 %604
      %606 = vadd.xlane.f32.xlu0 %v575
      %v607 = vpop.xlane.xlu0 %606
      %608 = vadd.xlane.f32.xlu0 %v577
      %v609 = vpop.xlane.xlu0 %608
      %610 = vadd.xlane.f32.xlu0 %v579
      %v611 = vpop.xlane.xlu0 %610
      %612 = vadd.xlane.f32.xlu0 %v581
      %v613 = vpop.xlane.xlu0 %612
      %614 = vadd.xlane.f32.xlu0 %v583
      %v615 = vpop.xlane.xlu0 %614
      %616 = vadd.xlane.f32.xlu0 %v585
      %v617 = vpop.xlane.xlu0 %616
      %618 = vadd.xlane.f32.xlu0 %v587
      %v619 = vpop.xlane.xlu0 %618
      %620 = vadd.xlane.f32.xlu0 %v589
      %v621 = vpop.xlane.xlu0 %620
      %622 = vadd.xlane.f32.xlu0 %v591
      %v623 = vpop.xlane.xlu0 %622
      %624 = vadd.xlane.f32.xlu0 %v593
      %v625 = vpop.xlane.xlu0 %624
      %626 = vadd.xlane.f32.xlu0 %v595
      %v627 = vpop.xlane.xlu0 %626
      %628 = vadd.xlane.f32.xlu0 %v597
      %v629 = vpop.xlane.xlu0 %628
      %v630 = vrcp.pop %v599
      %v631 = vrcp.pop %v601
      %v632 = vrcp.pop %v603
      %v633 = vrcp.pop %v605
      %v634 = vrcp.pop %v607
      %v635 = vrcp.pop %v609
      %v636 = vrcp.pop %v611
      %v637 = vrcp.pop %v613
      %v638 = vrcp.pop %v615
      %v639 = vrcp.pop %v617
      %v640 = vrcp.pop %v619
      %v641 = vrcp.pop %v621
      %v642 = vrcp.pop %v623
      %v643 = vrcp.pop %v625
      %v644 = vrcp.pop %v627
      %v645 = vrcp.pop %v629
      %v646 = vmul.f32 %v567, %v630
      %v647 = vmul.f32 %v569, %v631
      %v648 = vmul.f32 %v571, %v632
      %v649 = vmul.f32 %v573, %v633
      %v650 = vmul.f32 %v575, %v634
      %v651 = vmul.f32 %v577, %v635
      %v652 = vmul.f32 %v579, %v636
      %v653 = vmul.f32 %v581, %v637
      %v654 = vmul.f32 %v583, %v638
      %v655 = vmul.f32 %v585, %v639
      %v656 = vmul.f32 %v587, %v640
      %v657 = vmul.f32 %v589, %v641
      %v658 = vmul.f32 %v591, %v642
      %v659 = vmul.f32 %v593, %v643
      %v660 = vmul.f32 %v595, %v644
      %v661 = vmul.f32 %v597, %v645
      %v662 = vpack.c.bf16 %v647, %v646
      %v663 = vpack.c.bf16 %v649, %v648
      %v664 = vpack.c.bf16 %v651, %v650
      %v665 = vpack.c.bf16 %v653, %v652
      %v666 = vpack.c.bf16 %v655, %v654
      %v667 = vpack.c.bf16 %v657, %v656
      %v668 = vpack.c.bf16 %v659, %v658
      %v669 = vpack.c.bf16 %v661, %v660
      %670 = vmatprep.subr.bf16.mxu0 0
      %671 = vmatpush1.bf16.xpose.msra.mxu0 %v669
      %672 = vmatprep.subr.bf16.mxu0 0
      %673 = vmatpush1.bf16.xpose.msra.mxu0 %v668
      %674 = vmatprep.subr.bf16.mxu0 0
      %675 = vmatpush1.bf16.xpose.msra.mxu0 %v667
      %676 = vmatprep.subr.bf16.mxu0 0
      %677 = vmatpush1.bf16.xpose.msra.mxu0 %v666
      %678 = vmatprep.subr.bf16.mxu0 0
      %679 = vmatpush1.bf16.xpose.msra.mxu0 %v665
      %680 = vmatprep.subr.bf16.mxu0 0
      %681 = vmatpush1.bf16.xpose.msra.mxu0 %v664
      %682 = vmatprep.subr.bf16.mxu0 0
      %683 = vmatpush1.bf16.xpose.msra.mxu0 %v663
      %684 = vmatprep.subr.bf16.mxu0 0
      %685 = vmatpush1.bf16.xpose.msra.mxu0 %v662
      %686 = vmatprep.subr.bf16.mxu0 0
      %687 = vmatpush2.bf16.xpose.msra.mxu0 0
      %688 = vmatprep.subr.bf16.mxu0 0
      %689 = vmatpush2.bf16.xpose.msra.mxu0 0
      %690 = vmatprep.subr.bf16.mxu0 0
      %691 = vmatpush2.bf16.xpose.msra.mxu0 0
      %692 = vmatprep.subr.bf16.mxu0 0
      %693 = vmatpush2.bf16.xpose.msra.mxu0 0
      %694 = vmatprep.subr.bf16.mxu0 0
      %695 = vmatpush2.bf16.xpose.msra.mxu0 0
      %696 = vmatprep.subr.bf16.mxu0 0
      %697 = vmatpush2.bf16.xpose.msra.mxu0 0
      %698 = vmatprep.subr.bf16.mxu0 0
      %699 = vmatpush2.bf16.xpose.msra.mxu0 0
      %700 = vmatprep.subr.bf16.mxu0 0
      %701 = vmatpush2.bf16.xpose.msra.mxu0 0
      %702 = vmatprep.mubr.bf16.mxu0 0
      %703 = vmatmul.mubr.bf16.gmra.mxu0 %v361
      %v704 = vpop.f32.mrf.mxu0
      %v705 = vadd.f32 0.0, %v704
      %v706 = vpop.f32.mrf.mxu0
      %v707 = vpop.f32.mrf.mxu0
      %v708 = vpop.f32.mrf.mxu0
      %709 = vdwg.mxu0
      %v711 = vrot.slane %v359, 4
      %713 = vxpose.xlu0.c.b16.start [1/8] %v711, 128
      %714 = vxpose.xlu0.c.b16.cont [2/8] 0, 128
      %715 = vxpose.xlu0.c.b16.cont [3/8] 0, 128
      %716 = vxpose.xlu0.c.b16.cont [4/8] 0, 128
      %717 = vxpose.xlu0.c.b16.cont [5/8] 0, 128
      %718 = vxpose.xlu0.c.b16.cont [6/8] 0, 128
      %719 = vxpose.xlu0.c.b16.cont [7/8] 0, 128
      %720 = vxpose.xlu0.c.b16.end [8/8] 0, 128
      %v721 = vpop.trf.xlu0
      %v722 = vpop.trf.xlu0
      %v723 = vpop.trf.xlu0
      %v724 = vpop.trf.xlu0
      %v725 = vpop.trf.xlu0
      %v726 = vpop.trf.xlu0
      %v727 = vpop.trf.xlu0
      %v728 = vpop.trf.xlu0
      %v730 = vrot.slane %v360, 4
      %v732 = vsel %vm224, %v721, 0
      %v735 = vsel %vm224, %v722, 0
      %v738 = vsel %vm224, %v723, 0
      %v741 = vsel %vm224, %v724, 0
      %v744 = vsel %vm224, %v725, 0
      %v747 = vsel %vm224, %v726, 0
      %v750 = vsel %vm224, %v727, 0
      %v753 = vsel %vm224, %v728, 0
      %v756 = vsel %vm228, %v730, 0
      %758 = vmatprep.subr.bf16.mxu0 0
      %759 = vmatpush1.bf16.msra.mxu0 0
      %760 = vmatprep.subr.bf16.mxu0 0
      %761 = vmatpush1.bf16.msra.mxu0 0
      %762 = vmatprep.subr.bf16.mxu0 0
      %763 = vmatpush1.bf16.msra.mxu0 0
      %764 = vmatprep.subr.bf16.mxu0 0
      %765 = vmatpush1.bf16.msra.mxu0 0
      %766 = vmatprep.subr.bf16.mxu0 0
      %767 = vmatpush1.bf16.msra.mxu0 0
      %768 = vmatprep.subr.bf16.mxu0 0
      %769 = vmatpush1.bf16.msra.mxu0 0
      %770 = vmatprep.subr.bf16.mxu0 0
      %771 = vmatpush1.bf16.msra.mxu0 0
      %772 = vmatprep.subr.bf16.mxu0 0
      %773 = vmatpush1.bf16.msra.mxu0 %v756
      %774 = vmatprep.subr.bf16.mxu0 0
      %775 = vmatpush2.bf16.msra.mxu0 0
      %776 = vmatprep.subr.bf16.mxu0 0
      %777 = vmatpush2.bf16.msra.mxu0 0
      %778 = vmatprep.subr.bf16.mxu0 0
      %779 = vmatpush2.bf16.msra.mxu0 0
      %780 = vmatprep.subr.bf16.mxu0 0
      %781 = vmatpush2.bf16.msra.mxu0 0
      %782 = vmatprep.subr.bf16.mxu0 0
      %783 = vmatpush2.bf16.msra.mxu0 0
      %784 = vmatprep.subr.bf16.mxu0 0
      %785 = vmatpush2.bf16.msra.mxu0 0
      %786 = vmatprep.subr.bf16.mxu0 0
      %787 = vmatpush2.bf16.msra.mxu0 0
      %788 = vmatprep.subr.bf16.mxu0 0
      %789 = vmatpush2.bf16.msra.mxu0 0
      %790 = vmatprep.mubr.bf16.mxu0 0
      %791 = vmatmul.mubr.bf16.gmra.mxu0 %v732
      %v792 = vpop.f32.mrf.mxu0
      %v793 = vadd.f32 %v362, %v792
      %v794 = vpop.f32.mrf.mxu0
      %v795 = vpop.f32.mrf.mxu0
      %v796 = vadd.f32 %v363, %v795
      %v797 = vpop.f32.mrf.mxu0
      %798 = vmatprep.mubr.bf16.mxu0 0
      %799 = vmatmul.mubr.bf16.gmra.mxu0 %v735
      %v800 = vpop.f32.mrf.mxu0
      %v801 = vadd.f32 %v364, %v800
      %v802 = vpop.f32.mrf.mxu0
      %v803 = vpop.f32.mrf.mxu0
      %v804 = vadd.f32 %v365, %v803
      %v805 = vpop.f32.mrf.mxu0
      %806 = vmatprep.mubr.bf16.mxu0 0
      %807 = vmatmul.mubr.bf16.gmra.mxu0 %v738
      %v808 = vpop.f32.mrf.mxu0
      %v809 = vadd.f32 %v366, %v808
      %v810 = vpop.f32.mrf.mxu0
      %v811 = vpop.f32.mrf.mxu0
      %v812 = vadd.f32 %v367, %v811
      %v813 = vpop.f32.mrf.mxu0
      %814 = vmatprep.mubr.bf16.mxu0 0
      %815 = vmatmul.mubr.bf16.gmra.mxu0 %v741
      %v816 = vpop.f32.mrf.mxu0
      %v817 = vadd.f32 %v368, %v816
      %v818 = vpop.f32.mrf.mxu0
      %v819 = vpop.f32.mrf.mxu0
      %v820 = vadd.f32 %v369, %v819
      %v821 = vpop.f32.mrf.mxu0
      %822 = vmatprep.mubr.bf16.mxu0 0
      %823 = vmatmul.mubr.bf16.gmra.mxu0 %v744
      %v824 = vpop.f32.mrf.mxu0
      %v825 = vadd.f32 %v370, %v824
      %v826 = vpop.f32.mrf.mxu0
      %v827 = vpop.f32.mrf.mxu0
      %v828 = vadd.f32 %v371, %v827
      %v829 = vpop.f32.mrf.mxu0
      %830 = vmatprep.mubr.bf16.mxu0 0
      %831 = vmatmul.mubr.bf16.gmra.mxu0 %v747
      %v832 = vpop.f32.mrf.mxu0
      %v833 = vadd.f32 %v372, %v832
      %v834 = vpop.f32.mrf.mxu0
      %v835 = vpop.f32.mrf.mxu0
      %v836 = vadd.f32 %v373, %v835
      %v837 = vpop.f32.mrf.mxu0
      %838 = vmatprep.mubr.bf16.mxu0 0
      %839 = vmatmul.mubr.bf16.gmra.mxu0 %v750
      %v840 = vpop.f32.mrf.mxu0
      %v841 = vadd.f32 %v374, %v840
      %v842 = vpop.f32.mrf.mxu0
      %v843 = vpop.f32.mrf.mxu0
      %v844 = vadd.f32 %v375, %v843
      %v845 = vpop.f32.mrf.mxu0
      %846 = vmatprep.mubr.bf16.mxu0 0
      %847 = vmatmul.mubr.bf16.gmra.mxu0 %v753
      %v848 = vpop.f32.mrf.mxu0
      %v849 = vadd.f32 %v376, %v848
      %v850 = vpop.f32.mrf.mxu0
      %v851 = vpop.f32.mrf.mxu0
      %v852 = vadd.f32 %v377, %v851
      %v853 = vpop.f32.mrf.mxu0
      %854 = vdwg.mxu0
      %855 = vmax.xlane.f32.xlu0 %v793
      %v856 = vpop.xlane.xlu0 %855
      %857 = vmax.xlane.f32.xlu0 %v796
      %v858 = vpop.xlane.xlu0 %857
      %859 = vmax.xlane.f32.xlu0 %v801
      %v860 = vpop.xlane.xlu0 %859
      %861 = vmax.xlane.f32.xlu0 %v804
      %v862 = vpop.xlane.xlu0 %861
      %863 = vmax.xlane.f32.xlu0 %v809
      %v864 = vpop.xlane.xlu0 %863
      %865 = vmax.xlane.f32.xlu0 %v812
      %v866 = vpop.xlane.xlu0 %865
      %867 = vmax.xlane.f32.xlu0 %v817
      %v868 = vpop.xlane.xlu0 %867
      %869 = vmax.xlane.f32.xlu0 %v820
      %v870 = vpop.xlane.xlu0 %869
      %871 = vmax.xlane.f32.xlu0 %v825
      %v872 = vpop.xlane.xlu0 %871
      %873 = vmax.xlane.f32.xlu0 %v828
      %v874 = vpop.xlane.xlu0 %873
      %875 = vmax.xlane.f32.xlu0 %v833
      %v876 = vpop.xlane.xlu0 %875
      %877 = vmax.xlane.f32.xlu0 %v836
      %v878 = vpop.xlane.xlu0 %877
      %879 = vmax.xlane.f32.xlu0 %v841
      %v880 = vpop.xlane.xlu0 %879
      %881 = vmax.xlane.f32.xlu0 %v844
      %v882 = vpop.xlane.xlu0 %881
      %883 = vmax.xlane.f32.xlu0 %v849
      %v884 = vpop.xlane.xlu0 %883
      %885 = vmax.xlane.f32.xlu0 %v852
      %v886 = vpop.xlane.xlu0 %885
      %v887 = vsub.f32 %v793, %v856
      %v888 = vsub.f32 %v796, %v858
      %v889 = vsub.f32 %v801, %v860
      %v890 = vsub.f32 %v804, %v862
      %v891 = vsub.f32 %v809, %v864
      %v892 = vsub.f32 %v812, %v866
      %v893 = vsub.f32 %v817, %v868
      %v894 = vsub.f32 %v820, %v870
      %v895 = vsub.f32 %v825, %v872
      %v896 = vsub.f32 %v828, %v874
      %v897 = vsub.f32 %v833, %v876
      %v898 = vsub.f32 %v836, %v878
      %v899 = vsub.f32 %v841, %v880
      %v900 = vsub.f32 %v844, %v882
      %v901 = vsub.f32 %v849, %v884
      %v902 = vsub.f32 %v852, %v886
      %v903 = vmul.f32 %v887, 1.442695
      %v904 = vpow.pop %v903
      %v905 = vmul.f32 %v888, 1.442695
      %v906 = vpow.pop %v905
      %v907 = vmul.f32 %v889, 1.442695
      %v908 = vpow.pop %v907
      %v909 = vmul.f32 %v890, 1.442695
      %v910 = vpow.pop %v909
      %v911 = vmul.f32 %v891, 1.442695
      %v912 = vpow.pop %v911
      %v913 = vmul.f32 %v892, 1.442695
      %v914 = vpow.pop %v913
      %v915 = vmul.f32 %v893, 1.442695
      %v916 = vpow.pop %v915
      %v917 = vmul.f32 %v894, 1.442695
      %v918 = vpow.pop %v917
      %v919 = vmul.f32 %v895, 1.442695
      %v920 = vpow.pop %v919
      %v921 = vmul.f32 %v896, 1.442695
      %v922 = vpow.pop %v921
      %v923 = vmul.f32 %v897, 1.442695
      %v924 = vpow.pop %v923
      %v925 = vmul.f32 %v898, 1.442695
      %v926 = vpow.pop %v925
      %v927 = vmul.f32 %v899, 1.442695
      %v928 = vpow.pop %v927
      %v929 = vmul.f32 %v900, 1.442695
      %v930 = vpow.pop %v929
      %v931 = vmul.f32 %v901, 1.442695
      %v932 = vpow.pop %v931
      %v933 = vmul.f32 %v902, 1.442695
      %v934 = vpow.pop %v933
      %935 = vadd.xlane.f32.xlu0 %v904
      %v936 = vpop.xlane.xlu0 %935
      %937 = vadd.xlane.f32.xlu0 %v906
      %v938 = vpop.xlane.xlu0 %937
      %939 = vadd.xlane.f32.xlu0 %v908
      %v940 = vpop.xlane.xlu0 %939
      %941 = vadd.xlane.f32.xlu0 %v910
      %v942 = vpop.xlane.xlu0 %941
      %943 = vadd.xlane.f32.xlu0 %v912
      %v944 = vpop.xlane.xlu0 %943
      %945 = vadd.xlane.f32.xlu0 %v914
      %v946 = vpop.xlane.xlu0 %945
      %947 = vadd.xlane.f32.xlu0 %v916
      %v948 = vpop.xlane.xlu0 %947
      %949 = vadd.xlane.f32.xlu0 %v918
      %v950 = vpop.xlane.xlu0 %949
      %951 = vadd.xlane.f32.xlu0 %v920
      %v952 = vpop.xlane.xlu0 %951
      %953 = vadd.xlane.f32.xlu0 %v922
      %v954 = vpop.xlane.xlu0 %953
      %955 = vadd.xlane.f32.xlu0 %v924
      %v956 = vpop.xlane.xlu0 %955
      %957 = vadd.xlane.f32.xlu0 %v926
      %v958 = vpop.xlane.xlu0 %957
      %959 = vadd.xlane.f32.xlu0 %v928
      %v960 = vpop.xlane.xlu0 %959
      %961 = vadd.xlane.f32.xlu0 %v930
      %v962 = vpop.xlane.xlu0 %961
      %963 = vadd.xlane.f32.xlu0 %v932
      %v964 = vpop.xlane.xlu0 %963
      %965 = vadd.xlane.f32.xlu0 %v934
      %v966 = vpop.xlane.xlu0 %965
      %v967 = vrcp.pop %v936
      %v968 = vrcp.pop %v938
      %v969 = vrcp.pop %v940
      %v970 = vrcp.pop %v942
      %v971 = vrcp.pop %v944
      %v972 = vrcp.pop %v946
      %v973 = vrcp.pop %v948
      %v974 = vrcp.pop %v950
      %v975 = vrcp.pop %v952
      %v976 = vrcp.pop %v954
      %v977 = vrcp.pop %v956
      %v978 = vrcp.pop %v958
      %v979 = vrcp.pop %v960
      %v980 = vrcp.pop %v962
      %v981 = vrcp.pop %v964
      %v982 = vrcp.pop %v966
      %v983 = vmul.f32 %v904, %v967
      %v984 = vmul.f32 %v906, %v968
      %v985 = vmul.f32 %v908, %v969
      %v986 = vmul.f32 %v910, %v970
      %v987 = vmul.f32 %v912, %v971
      %v988 = vmul.f32 %v914, %v972
      %v989 = vmul.f32 %v916, %v973
      %v990 = vmul.f32 %v918, %v974
      %v991 = vmul.f32 %v920, %v975
      %v992 = vmul.f32 %v922, %v976
      %v993 = vmul.f32 %v924, %v977
      %v994 = vmul.f32 %v926, %v978
      %v995 = vmul.f32 %v928, %v979
      %v996 = vmul.f32 %v930, %v980
      %v997 = vmul.f32 %v932, %v981
      %v998 = vmul.f32 %v934, %v982
      %v999 = vpack.c.bf16 %v984, %v983
      %v1000 = vpack.c.bf16 %v986, %v985
      %v1001 = vpack.c.bf16 %v988, %v987
      %v1002 = vpack.c.bf16 %v990, %v989
      %v1003 = vpack.c.bf16 %v992, %v991
      %v1004 = vpack.c.bf16 %v994, %v993
      %v1005 = vpack.c.bf16 %v996, %v995
      %v1006 = vpack.c.bf16 %v998, %v997
      %v1008 = vrot.slane %v361, 4
      %1010 = vmatprep.subr.bf16.mxu0 0
      %1011 = vmatpush1.bf16.xpose.msra.mxu0 %v1006
      %1012 = vmatprep.subr.bf16.mxu0 0
      %1013 = vmatpush1.bf16.xpose.msra.mxu0 %v1005
      %1014 = vmatprep.subr.bf16.mxu0 0
      %1015 = vmatpush1.bf16.xpose.msra.mxu0 %v1004
      %1016 = vmatprep.subr.bf16.mxu0 0
      %1017 = vmatpush1.bf16.xpose.msra.mxu0 %v1003
      %1018 = vmatprep.subr.bf16.mxu0 0
      %1019 = vmatpush1.bf16.xpose.msra.mxu0 %v1002
      %1020 = vmatprep.subr.bf16.mxu0 0
      %1021 = vmatpush1.bf16.xpose.msra.mxu0 %v1001
      %1022 = vmatprep.subr.bf16.mxu0 0
      %1023 = vmatpush1.bf16.xpose.msra.mxu0 %v1000
      %1024 = vmatprep.subr.bf16.mxu0 0
      %1025 = vmatpush1.bf16.xpose.msra.mxu0 %v999
      %1026 = vmatprep.subr.bf16.mxu0 0
      %1027 = vmatpush2.bf16.xpose.msra.mxu0 0
      %1028 = vmatprep.subr.bf16.mxu0 0
      %1029 = vmatpush2.bf16.xpose.msra.mxu0 0
      %1030 = vmatprep.subr.bf16.mxu0 0
      %1031 = vmatpush2.bf16.xpose.msra.mxu0 0
      %1032 = vmatprep.subr.bf16.mxu0 0
      %1033 = vmatpush2.bf16.xpose.msra.mxu0 0
      %1034 = vmatprep.subr.bf16.mxu0 0
      %1035 = vmatpush2.bf16.xpose.msra.mxu0 0
      %1036 = vmatprep.subr.bf16.mxu0 0
      %1037 = vmatpush2.bf16.xpose.msra.mxu0 0
      %1038 = vmatprep.subr.bf16.mxu0 0
      %1039 = vmatpush2.bf16.xpose.msra.mxu0 0
      %1040 = vmatprep.subr.bf16.mxu0 0
      %1041 = vmatpush2.bf16.xpose.msra.mxu0 0
      %1042 = vmatprep.mubr.bf16.mxu0 0
      %1043 = vmatmul.mubr.bf16.gmra.mxu0 %v1008
      %v1044 = vpop.f32.mrf.mxu0
      %v1045 = vadd.f32 0.0, %v1044
      %v1046 = vpop.f32.mrf.mxu0
      %v1047 = vpop.f32.mrf.mxu0
      %v1048 = vpop.f32.mrf.mxu0
      %1049 = vdwg.mxu0
      %v1050 = vpack.c.bf16 %v1045, %v705
      %v1051 = vld [vmem:[%s2] sm:$0xf]
      %vm1052 = vcmask 130048
      %v1054 = vsel %vm1052, %v1051, 0
      %1056 = vmatprep.subr.bf16.mxu0 0
      %1057 = vmatpush1.bf16.msra.mxu0 0
      %1058 = vmatprep.subr.bf16.mxu0 0
      %1059 = vmatpush1.bf16.msra.mxu0 0
      %1060 = vmatprep.subr.bf16.mxu0 0
      %1061 = vmatpush1.bf16.msra.mxu0 0
      %1062 = vmatprep.subr.bf16.mxu0 0
      %1063 = vmatpush1.bf16.msra.mxu0 0
      %1064 = vmatprep.subr.bf16.mxu0 0
      %1065 = vmatpush1.bf16.msra.mxu0 0
      %1066 = vmatprep.subr.bf16.mxu0 0
      %1067 = vmatpush1.bf16.msra.mxu0 0
      %1068 = vmatprep.subr.bf16.mxu0 0
      %1069 = vmatpush1.bf16.msra.mxu0 0
      %1070 = vmatprep.subr.bf16.mxu0 0
      %1071 = vmatpush1.bf16.msra.mxu0 %v1050
      %1072 = vmatprep.subr.bf16.mxu0 0
      %1073 = vmatpush2.bf16.msra.mxu0 0
      %1074 = vmatprep.subr.bf16.mxu0 0
      %1075 = vmatpush2.bf16.msra.mxu0 0
      %1076 = vmatprep.subr.bf16.mxu0 0
      %1077 = vmatpush2.bf16.msra.mxu0 0
      %1078 = vmatprep.subr.bf16.mxu0 0
      %1079 = vmatpush2.bf16.msra.mxu0 0
      %1080 = vmatprep.subr.bf16.mxu0 0
      %1081 = vmatpush2.bf16.msra.mxu0 0
      %1082 = vmatprep.subr.bf16.mxu0 0
      %1083 = vmatpush2.bf16.msra.mxu0 0
      %1084 = vmatprep.subr.bf16.mxu0 0
      %1085 = vmatpush2.bf16.msra.mxu0 0
      %1086 = vmatprep.subr.bf16.mxu0 0
      %1087 = vmatpush2.bf16.msra.mxu0 0
      %1088 = vmatprep.mubr.bf16.mxu0 0
      %1089 = vmatmul.mubr.bf16.gmra.mxu0 %v1054
      %v1090 = vpop.f32.mrf.mxu0
      %v1091 = vadd.f32 0.0, %v1090
      %v1092 = vpop.f32.mrf.mxu0
      %v1093 = vpop.f32.mrf.mxu0
      %v1094 = vpop.f32.mrf.mxu0
      %1095 = vdwg.mxu0
      %v1096 = vadd.f32 %v221, %v267
      %v1097 = vadd.f32 %v1096, %v1091
      %1098 = vst [vmem:[%s219] sm:$0xff] %v1097
      %p1099 = scmp.lt.s32.totalorder %s16, 1
      %s1100 = scalar_select %p1099, %s16, 1
      %s1101 = smul.addr %s1100, 8
      %s1102 = scalar_lea.vmem %s5, %s1101
      // Predicated region
      $region41: #{sfb_forward.1} parent=39 // pred_check
        %p1103 = pneg %p144
      $region42: #{sfb_forward.1} parent=39 // pred_check_branch
        %1105 = sbr.rel (%p1103) target = $region44
      $region43: #{sfb_forward.1} parent=39 // pred_region
        _
      $region44: #{sfb_forward.1} parent=39 // pred_fallthru
        _
    $region40: #{sfb_forward.1} parent=5 // pred_fallthru
      _
    %p1106 = scmp.le.s32.totalorder 2, %s11
    // Predicated region
    $region45: #{sfb_forward.1} parent=5 // pred_check
      %p1107 = pneg %p1106
    $region46: #{sfb_forward.1} parent=5 // pred_check_branch
      %1109 = sbr.rel (%p1107) target = $region48
    $region47: #{sfb_forward.1} parent=5 // pred_region
      %s1110 = ssub.s32 %s11, 2
      // Predicated region
      $region49: #{sfb_forward.1} parent=47 // pred_check
        %p1111 = pneg %p150
      $region50: #{sfb_forward.1} parent=47 // pred_check_branch
        %1113 = sbr.rel (%p1111) target = $region52
      $region51: #{sfb_forward.1} parent=47 // pred_region
        %p1114 = scmp.lt.s32.totalorder %s17, 1
        %s1115 = scalar_select %p1114, %s17, 1
        %s1116 = smul.addr %s1115, 8
        %s1117 = scalar_lea.vmem %s5, %s1116
      $region52: #{sfb_forward.1} parent=47 // pred_fallthru
        _
    $region48: #{sfb_forward.1} parent=5 // pred_fallthru
      _
  $region6: #{sfb_forward.1} parent=0 // loop_footer
    %s15 = sadd.s32 1, %s11
  $region7: #{sfb_forward.1} parent=0 // loop_footer_branch
    %10 = sbr.rel target = $region3
  $region8: #{sfb_forward.1} parent=0 // loop_exit
    _

</llo_original>
